<compile_context>
chip_gen: v5e
topology: v5e:2x2
jax: 0.10.0
libtpu: 0.0.40
codegen_flags: <defaults>
</compile_context>

<pallas_src>
import functools

import jax
import jax.numpy as jnp
from jax.experimental import pallas as pl
from jax.experimental.pallas import tpu as pltpu

EPS = 1e-5


def _vmem_budget_bytes():
    """Scoped-VMEM budget to request: ~half of physical VMEM, capped at 48 MiB
    (48 MiB on v5e/v6e's 128 MiB, 32 MiB on v7x's 64 MiB)."""
    phys = 64 << 20                       # conservative default (v7x physical)
    try:
        info = pltpu.get_tpu_info()
        phys = int(getattr(info, "vmem_capacity_bytes", phys))
    except Exception:
        pass
    return min(48 << 20, max(16 << 20, phys // 2))


def _pick_hw_tile(hw, lane_bytes, target_bytes):
    """Lane (H*W) tile: the full extent, or a large multiple of 128 sized so the
    per-step (input + output) blocks are around `target_bytes`."""
    budget_lanes = max(128, target_bytes // max(lane_bytes, 1))
    if hw <= budget_lanes:
        return hw                          # full extent is always legal
    return max(128, (budget_lanes // 128) * 128)


def _pick_nb(n, per_image_bytes, target_bytes):
    """How many whole images to pack into one grid step (must divide n)."""
    want = max(1, target_bytes // max(per_image_bytes, 1))
    nb = 1
    for d in range(1, n + 1):
        if n % d == 0 and d <= want:
            nb = d
    return nb


# ---------------------------------------------------------------------------
# Kernel 1: per-channel sum / sum-of-squares over H*W, accumulated per image
# (or per hw-split when the reduction is core-split at N == 1).
# Grid: (g0, tiles_per_split).  Leading axis parallel; tile axis = reduction.
# ---------------------------------------------------------------------------
def _stats_kernel(x_ref, sum_ref, sq_ref, *, hw, hw_tile, num_t, tps, split,
                  needs_mask):
    t = pl.program_id(1)

    @pl.when(t == 0)
    def _():
        sum_ref[...] = jnp.zeros_like(sum_ref)
        sq_ref[...] = jnp.zeros_like(sq_ref)

    x = x_ref[...].astype(jnp.float32)                  # (nb, C, hw_tile)

    def _accum(xv):
        sum_ref[...] += jnp.sum(xv, axis=2, keepdims=True)
        sq_ref[...] += jnp.sum(xv * xv, axis=2, keepdims=True)

    if not needs_mask:
        _accum(x)
    else:
        # Only the globally-last hw tile is ragged: mask just that one so full
        # tiles pay no iota/compare/select cost.
        gt = (pl.program_id(0) % split) * tps + t if split > 1 else t
        is_last = gt == num_t - 1

        @pl.when(jnp.logical_not(is_last))
        def _():
            _accum(x)

        @pl.when(is_last)
        def _():
            lane = jax.lax.broadcasted_iota(jnp.int32, x.shape, 2)
            valid = (num_t - 1) * hw_tile + lane < hw
            _accum(jnp.where(valid, x, 0.0))


# ---------------------------------------------------------------------------
# Kernel 2: fused (BN-folded) 1x1 conv + bias + ReLU, written straight to NCHW.
# Each grid step: nb x [(O, C) @ (C, hw_tile)] on the MXU -> (O, hw_tile) blocks.
# Activations stay in their native dtype; accumulation is fp32.
# ---------------------------------------------------------------------------
def _conv_relu_kernel(x_ref, w_ref, b_ref, o_ref, *, act, nb):
    w = w_ref[...]                                      # (O, C), x dtype
    b = b_ref[...]                                      # (O, 1), fp32
    for i in range(nb):                                 # nb is small & static
        y = jnp.dot(w, x_ref[i], preferred_element_type=jnp.float32)
        y = y + b                                       # lane-broadcast bias
        if act:
            y = jnp.maximum(y, 0.0)
        o_ref[i] = y.astype(o_ref.dtype)


def change_channels(x_nchw, gamma, beta, conv_w, conv_b, *, act=True):
    """Forward pass of ChangeChannels. x_nchw: (N, C, H, W)."""
    N, C, H, W = x_nchw.shape
    O = conv_w.shape[0]
    HW = H * W
    R = N * HW
    itemsize = jnp.dtype(x_nchw.dtype).itemsize

    x3d = x_nchw.reshape(N, C, HW)                      # free view, stays NCHW

    vmem_limit = _vmem_budget_bytes()
    target = vmem_limit // 4                            # per-step block budget

    # --- pass 1: batch statistics (per-channel sum / sumsq) -------------------
    hw_tile1 = _pick_hw_tile(HW, itemsize * C, target)  # input-only footprint
    num_t1 = pl.cdiv(HW, hw_tile1)
    needs_mask = (HW % hw_tile1) != 0
    nb1 = _pick_nb(N, itemsize * C * HW, target) if num_t1 == 1 else 1

    # core-split of the reduction so both TensorCores have work even at N == 1
    split = 2 if (nb1 == 1 and N == 1 and num_t1 >= 2 and num_t1 % 2 == 0) else 1
    tps = num_t1 // split
    g0 = (N // nb1) * split

    if split == 1:
        x_map1 = lambda g, t: (g, 0, t)
    else:
        x_map1 = lambda g, t: (g // split, 0, (g % split) * tps + t)

    sums, sqs = pl.pallas_call(
        functools.partial(_stats_kernel, hw=HW, hw_tile=hw_tile1, num_t=num_t1,
                          tps=tps, split=split, needs_mask=needs_mask),
        out_shape=(jax.ShapeDtypeStruct((g0 * nb1, C, 1), jnp.float32),
                   jax.ShapeDtypeStruct((g0 * nb1, C, 1), jnp.float32)),
        grid=(g0, tps),
        in_specs=[pl.BlockSpec((nb1, C, hw_tile1), x_map1)],
        out_specs=(pl.BlockSpec((nb1, C, 1), lambda g, t: (g, 0, 0)),
                   pl.BlockSpec((nb1, C, 1), lambda g, t: (g, 0, 0))),
        compiler_params=pltpu.CompilerParams(
            dimension_semantics=("parallel", "arbitrary"),
            vmem_limit_bytes=vmem_limit),
    )(x3d)

    s = jnp.sum(sums, axis=0)[:, 0]                     # (C,) tiny XLA finish
    sq = jnp.sum(sqs, axis=0)[:, 0]                     # (C,)
    mean = s / R
    # TODO(synk): one-pass E[x^2]-mean^2 variance (clamped >= 0); switch to a
    # shifted/two-pass accumulation if |mean| >> std for production data.
    var = jnp.maximum(sq / R - mean * mean, 0.0)        # biased var (train BN)

    # --- fold BN affine into the 1x1 conv (O(C*O), runs once in XLA) ----------
    scale = gamma.astype(jnp.float32) * jax.lax.rsqrt(var + EPS)        # (C,)
    shift = beta.astype(jnp.float32) - mean * scale                     # (C,)
    w2d = conv_w.reshape(O, C).astype(jnp.float32)
    w_fold = (w2d * scale[None, :]).astype(x_nchw.dtype)                # (O, C)
    b_fold = (w2d @ shift + conv_b.astype(jnp.float32)).reshape(O, 1)   # fp32

    # --- pass 2: relu(W' @ x + b'), output written directly in NCHW -----------
    hw_tile2 = _pick_hw_tile(HW, itemsize * (C + O), target)
    num_t2 = pl.cdiv(HW, hw_tile2)
    nb2 = _pick_nb(N, itemsize * (C + O) * HW, target) if num_t2 == 1 else 1

    y3d = pl.pallas_call(
        functools.partial(_conv_relu_kernel, act=act, nb=nb2),
        out_shape=jax.ShapeDtypeStruct((N, O, HW), x_nchw.dtype),
        grid=(N // nb2, num_t2),
        in_specs=[
            pl.BlockSpec((nb2, C, hw_tile2), lambda g, t: (g, 0, t)),  # x block
            # TODO(synk): mark these constant blocks single-buffered
            # (pipeline_mode=pl.Buffered(1)) once supported on the target jax.
            pl.BlockSpec((O, C), lambda g, t: (0, 0)),                 # folded W
            pl.BlockSpec((O, 1), lambda g, t: (0, 0)),                 # folded b
        ],
        out_specs=pl.BlockSpec((nb2, O, hw_tile2), lambda g, t: (g, 0, t)),
        compiler_params=pltpu.CompilerParams(
            dimension_semantics=("parallel", "parallel"),
            vmem_limit_bytes=vmem_limit),
    )(x3d, w_fold, b_fold)

    return y3d.reshape(N, O, H, W)


def _reference(x_nchw, gamma, beta, conv_w, conv_b, act=True):
    """Pure-JAX reference matching PyTorch train-mode BN + 1x1 conv + relu."""
    mean = jnp.mean(x_nchw, axis=(0, 2, 3), keepdims=True)
    var = jnp.mean((x_nchw - mean) ** 2, axis=(0, 2, 3), keepdims=True)
    xn = (x_nchw - mean) / jnp.sqrt(var + EPS)
    xn = xn * gamma[None, :, None, None] + beta[None, :, None, None]
    w = conv_w.reshape(conv_w.shape[0], conv_w.shape[1])       # (O, C)
    y = jnp.einsum('nchw,oc->nohw', xn, w) + conv_b[None, :, None, None]
    if act:
        y = jnp.maximum(y, 0.0)
    return y


if __name__ == "__main__":
    key = jax.random.PRNGKey(0)
    k_x, k_g, k_b, k_w, k_c = jax.random.split(key, 5)

    N, C_IN, C_OUT, HW = 2, 4, 8, 16

    x = jax.random.normal(k_x, (N, C_IN, HW, HW), dtype=jnp.float32)

    # deterministic synthetic parameters (shapes from nn.BatchNorm2d(i), nn.Conv2d(i, o, 1))
    gamma = 1.0 + 0.1 * jax.random.normal(k_g, (C_IN,), dtype=jnp.float32)
    beta = 0.1 * jax.random.normal(k_b, (C_IN,), dtype=jnp.float32)
    conv_w = jax.random.normal(k_w, (C_OUT, C_IN, 1, 1), dtype=jnp.float32) * 0.5
    conv_b = 0.1 * jax.random.normal(k_c, (C_OUT,), dtype=jnp.float32)

    out = change_channels(x, gamma, beta, conv_w, conv_b, act=True)
    out = jax.block_until_ready(out)

    ref = _reference(x, gamma, beta, conv_w, conv_b, act=True)
    assert out.shape == (N, C_OUT, HW, HW)
    assert jnp.allclose(out, ref, atol=1e-4, rtol=1e-4), "mismatch vs reference"

    print("KERNEL_OK")
</pallas_src>

<mosaic_0001>
module attributes {stable_mosaic.version = 11 : i64} {
  func.func @_stats_kernel(%arg0: i32, %arg1: i32, %arg2: memref<2x4x256xf32, #tpu.memory_space<vmem>>, %arg3: memref<2x4x1xf32, #tpu.memory_space<vmem>>, %arg4: memref<2x4x1xf32, #tpu.memory_space<vmem>>) attributes {dimension_semantics = [#tpu.dimension_semantics<parallel>, #tpu.dimension_semantics<arbitrary>], iteration_bounds = array<i64: 1, 1>, scalar_prefetch = 0 : i64, scratch_operands = 0 : i64, tpu.core_type = #tpu.core_type<tc>, window_params = [{transform_indices = @transform_0, window_bounds = array<i64: 2, 4, 256>}, {transform_indices = @transform_1, window_bounds = array<i64: 2, 4, 1>}, {transform_indices = @transform_2, window_bounds = array<i64: 2, 4, 1>}]} {
    %c0_i32 = arith.constant 0 : i32
    %0 = arith.cmpi eq, %arg1, %c0_i32 : i32
    %1 = arith.extui %0 : i1 to i32
    %c0_i32_0 = arith.constant 0 : i32
    %2 = arith.cmpi ne, %1, %c0_i32_0 : i32
    scf.if %2 {
      %cst_16 = arith.constant 0.000000e+00 : f32
      %15 = vector.broadcast %cst_16 : f32 to vector<2x4x1xf32>
      %c0_17 = arith.constant 0 : index
      %c0_18 = arith.constant 0 : index
      %c0_19 = arith.constant 0 : index
      %16 = vector.load %arg3[%c0_17, %c0_18, %c0_19] : memref<2x4x1xf32, #tpu.memory_space<vmem>>, vector<2x4x1xf32>
      tpu.vector_store %arg3[%c0_17, %c0_18, %c0_19], %15 {strides = array<i32>} : memref<2x4x1xf32, #tpu.memory_space<vmem>>, vector<2x4x1xf32>,
      %cst_20 = arith.constant 0.000000e+00 : f32
      %17 = vector.broadcast %cst_20 : f32 to vector<2x4x1xf32>
      %c0_21 = arith.constant 0 : index
      %c0_22 = arith.constant 0 : index
      %c0_23 = arith.constant 0 : index
      %18 = vector.load %arg4[%c0_21, %c0_22, %c0_23] : memref<2x4x1xf32, #tpu.memory_space<vmem>>, vector<2x4x1xf32>
      tpu.vector_store %arg4[%c0_21, %c0_22, %c0_23], %17 {strides = array<i32>} : memref<2x4x1xf32, #tpu.memory_space<vmem>>, vector<2x4x1xf32>,
    } else {
    }
    %c0 = arith.constant 0 : index
    %c0_1 = arith.constant 0 : index
    %c0_2 = arith.constant 0 : index
    %3 = vector.load %arg2[%c0, %c0_1, %c0_2] : memref<2x4x256xf32, #tpu.memory_space<vmem>>, vector<2x4x256xf32>
    %c0_3 = arith.constant 0 : index
    %c0_4 = arith.constant 0 : index
    %c0_5 = arith.constant 0 : index
    %4 = vector.load %arg3[%c0_3, %c0_4, %c0_5] : memref<2x4x1xf32, #tpu.memory_space<vmem>>, vector<2x4x1xf32>
    %cst = arith.constant dense<0.000000e+00> : vector<2x4xf32>
    %5 = vector.multi_reduction <add>, %3, %cst [2] : vector<2x4x256xf32> to vector<2x4xf32>
    %6 = vector.shape_cast %5 : vector<2x4xf32> to vector<2x4x1xf32>
    %7 = arith.addf %4, %6 : vector<2x4x1xf32>
    %c0_6 = arith.constant 0 : index
    %c0_7 = arith.constant 0 : index
    %c0_8 = arith.constant 0 : index
    %8 = vector.load %arg3[%c0_6, %c0_7, %c0_8] : memref<2x4x1xf32, #tpu.memory_space<vmem>>, vector<2x4x1xf32>
    tpu.vector_store %arg3[%c0_6, %c0_7, %c0_8], %7 {strides = array<i32>} : memref<2x4x1xf32, #tpu.memory_space<vmem>>, vector<2x4x1xf32>,
    %c0_9 = arith.constant 0 : index
    %c0_10 = arith.constant 0 : index
    %c0_11 = arith.constant 0 : index
    %9 = vector.load %arg4[%c0_9, %c0_10, %c0_11] : memref<2x4x1xf32, #tpu.memory_space<vmem>>, vector<2x4x1xf32>
    %10 = arith.mulf %3, %3 : vector<2x4x256xf32>
    %cst_12 = arith.constant dense<0.000000e+00> : vector<2x4xf32>
    %11 = vector.multi_reduction <add>, %10, %cst_12 [2] : vector<2x4x256xf32> to vector<2x4xf32>
    %12 = vector.shape_cast %11 : vector<2x4xf32> to vector<2x4x1xf32>
    %13 = arith.addf %9, %12 : vector<2x4x1xf32>
    %c0_13 = arith.constant 0 : index
    %c0_14 = arith.constant 0 : index
    %c0_15 = arith.constant 0 : index
    %14 = vector.load %arg4[%c0_13, %c0_14, %c0_15] : memref<2x4x1xf32, #tpu.memory_space<vmem>>, vector<2x4x1xf32>
    tpu.vector_store %arg4[%c0_13, %c0_14, %c0_15], %13 {strides = array<i32>} : memref<2x4x1xf32, #tpu.memory_space<vmem>>, vector<2x4x1xf32>,
    return
  }
  func.func @transform_0(%arg0: i32, %arg1: i32) -> (i32, i32, i32) {
    %c0_i32 = arith.constant 0 : i32
    %c0_i32_0 = arith.constant 0 : i32
    return %arg0, %c0_i32, %arg1 : i32, i32, i32
  }
  func.func @transform_1(%arg0: i32, %arg1: i32) -> (i32, i32, i32) {
    %c0_i32 = arith.constant 0 : i32
    %c0_i32_0 = arith.constant 0 : i32
    %c0_i32_1 = arith.constant 0 : i32
    return %arg0, %c0_i32, %c0_i32_0 : i32, i32, i32
  }
  func.func @transform_2(%arg0: i32, %arg1: i32) -> (i32, i32, i32) {
    %c0_i32 = arith.constant 0 : i32
    %c0_i32_0 = arith.constant 0 : i32
    %c0_i32_1 = arith.constant 0 : i32
    return %arg0, %c0_i32, %c0_i32_0 : i32, i32, i32
  }
}

</mosaic_0001>

<llo_original>
// kernel: tpu_custom_call.1
$region0: #{tpu_custom_call.1}
  #allocation0 [shape = 'u32[]', space=smem, size = 0x4, offset = 0x4, fixed_abs, tag = 'smem constant byte address 0x4 - core index']
  #allocation1 [shape = 'u32[72,128]{1,0:T(1,128)}', space=vmem, size = 0x9000, scoped, tag = 'internal scratch']
  %s0 = inlined_call_operand.hbm [shape: f32[2,4,256], index: 0, kind: input, shape index: {}]
  %s1 = inlined_call_operand.vmem [shape: f32[2,4,1], index: 1, kind: output, shape index: {0}]
  %s2 = inlined_call_operand.vmem [shape: f32[2,4,1], index: 2, kind: output, shape index: {1}]
  %3 = xla_tuple %s1, %s2
  %s4 = sld [smem:[#allocation0]]
  $region30: #{tpu_custom_call.1} parent=0
    _
  %s6 = ssub.s32 1, %s4
  %s7 = scalar_select 0, %s6, %s4
  $region1: #{tpu_custom_call.1} parent=0
    #allocation2 [shape = 'u8[8192]{0}', space=vmem, size = 0x2000, scoped, tag = 'input window, operand 0, single buffered']
    #allocation3 [shape = 's32[1]{0}', space=sflag, size = 0x4, scoped, tag = 'scoped memory for tpu_custom_call.1']
    %8 = vsyncpa [#allocation3], 0
    // Predicated region
    $region2: #{tpu_custom_call.1} parent=1 // pred_check
      _
    $region3: #{tpu_custom_call.1} parent=1 // pred_check_branch
      %10 = sbr.rel (0) target = $region5
    $region4: #{tpu_custom_call.1} parent=1 // pred_region
      %12 = vsyncadd [#allocation3], 0
      %s13 = sshll.u32 %s0, 4
      %s14 = int_to_ptr.hbm [resolvable:$true] %s13
      %s15 = sshll.u32 [#allocation2], 4
      %s16 = int_to_ptr.vmem [resolvable:$true] %s15
      %21 = dma.hbm_to_vmem [thread:$0]  %s14, 256, %s16, [#allocation3], 128, 128, 8
    $region5: #{tpu_custom_call.1} parent=1 // pred_fallthru
      _
    // Predicated region
    $region6: #{tpu_custom_call.1} parent=1 // pred_check
      _
    $region7: #{tpu_custom_call.1} parent=1 // pred_check_branch
      %23 = sbr.rel (0) target = $region9
    $region8: #{tpu_custom_call.1} parent=1 // pred_region
      %25 = dma.done [#allocation3], 256
    $region9: #{tpu_custom_call.1} parent=1 // pred_fallthru
      _
    %p26 = scmp.eq.s32.totalorder 0, 0
    // Predicated region
    $region10: #{tpu_custom_call.1} parent=1 // pred_check
      %p27 = pneg %p26
    $region11: #{tpu_custom_call.1} parent=1 // pred_check_branch
      %29 = sbr.rel (%p27) target = $region13
    $region12: #{tpu_custom_call.1} parent=1 // pred_region
      %vm30 = vcmask 3072
      %31 = vst.msk [vmem:[%s1] sm:$0xf] %vm30, 0.0
      %32 = vst.msk [vmem:[%s1 + $0x4] sm:$0xf] %vm30, 0.0
      %33 = vst.msk [vmem:[%s2] sm:$0xf] %vm30, 0.0
      %34 = vst.msk [vmem:[%s2 + $0x4] sm:$0xf] %vm30, 0.0
    $region13: #{tpu_custom_call.1} parent=1 // pred_fallthru
      _
    %v35 = vld [vmem:[#allocation2] sm:$0xff]
    %v36 = vld [vmem:[#allocation2 + $0x8] sm:$0xff]
    %v37 = vld [vmem:[%s1] sm:$0xf]
    %v38 = vld [vmem:[%s1 + $0x4] sm:$0xf]
    %41 = vst [vmem:[#allocation1] ss:$2 sm:$0xff] %v35
    %v42 = vld.sshfl [vmem:[#allocation1] sm:$0xff pattern:$0x75316420]
    %v43 = vld.sshfl [vmem:[#allocation1 + $0x8] sm:$0xff pattern:$0x75316420]
    %s44 = scalar_lea.vmem [#allocation1], 16
    %45 = vst [vmem:[%s44] ss:$2 sm:$0xff] %v36
    %v46 = vld.sshfl [vmem:[#allocation1 + $0x10] sm:$0xff pattern:$0x75316420]
    %v47 = vld.sshfl [vmem:[#allocation1 + $0x18] sm:$0xff pattern:$0x75316420]
    %vm52 = vcmask 1043456
    %v53 = vsel %vm52, %v42, 0.0
    %v54 = vsel %vm52, %v43, 0.0
    %v55 = vadd.f32 %v53, %v54
    %56 = vadd.xlane.f32.xlu0 %v55
    %v57 = vpop.xlane.xlu0 %56
    %v58 = vsel %vm52, %v46, 0.0
    %v59 = vsel %vm52, %v47, 0.0
    %v60 = vadd.f32 %v58, %v59
    %61 = vadd.xlane.f32.xlu0 %v60
    %v62 = vpop.xlane.xlu0 %61
    %v63 = vadd.f32 %v37, %v57
    %v64 = vadd.f32 %v38, %v62
    %vm65 = vcmask 3072
    %66 = vst.msk [vmem:[%s1] sm:$0xf] %vm65, %v63
    %67 = vst.msk [vmem:[%s1 + $0x4] sm:$0xf] %vm65, %v64
    %v68 = vld [vmem:[%s2] sm:$0xf]
    %v69 = vld [vmem:[%s2 + $0x4] sm:$0xf]
    %v70 = vmul.f32 %v35, %v35
    %v71 = vmul.f32 %v36, %v36
    %74 = vst [vmem:[#allocation1] ss:$2 sm:$0xff] %v70
    %v75 = vld.sshfl [vmem:[#allocation1] sm:$0xff pattern:$0x75316420]
    %v76 = vld.sshfl [vmem:[#allocation1 + $0x8] sm:$0xff pattern:$0x75316420]
    %s77 = scalar_lea.vmem [#allocation1], 16
    %78 = vst [vmem:[%s77] ss:$2 sm:$0xff] %v71
    %v79 = vld.sshfl [vmem:[#allocation1 + $0x10] sm:$0xff pattern:$0x75316420]
    %v80 = vld.sshfl [vmem:[#allocation1 + $0x18] sm:$0xff pattern:$0x75316420]
    %v85 = vsel %vm52, %v75, 0.0
    %v86 = vsel %vm52, %v76, 0.0
    %v87 = vadd.f32 %v85, %v86
    %88 = vadd.xlane.f32.xlu0 %v87
    %v89 = vpop.xlane.xlu0 %88
    %v90 = vsel %vm52, %v79, 0.0
    %v91 = vsel %vm52, %v80, 0.0
    %v92 = vadd.f32 %v90, %v91
    %93 = vadd.xlane.f32.xlu0 %v92
    %v94 = vpop.xlane.xlu0 %93
    %v95 = vadd.f32 %v68, %v89
    %v96 = vadd.f32 %v69, %v94
    %97 = vst.msk [vmem:[%s2] sm:$0xf] %vm65, %v95
    %98 = vst.msk [vmem:[%s2 + $0x4] sm:$0xf] %vm65, %v96
    // Predicated region
    $region14: #{tpu_custom_call.1} parent=1 // pred_check
      _
    $region15: #{tpu_custom_call.1} parent=1 // pred_check_branch
      %100 = sbr.rel (0) target = $region17
    $region16: #{tpu_custom_call.1} parent=1 // pred_region
      _
    $region17: #{tpu_custom_call.1} parent=1 // pred_fallthru
      _
    // Predicated region
    $region18: #{tpu_custom_call.1} parent=1 // pred_check
      _
    $region19: #{tpu_custom_call.1} parent=1 // pred_check_branch
      %102 = sbr.rel (0) target = $region21
    $region20: #{tpu_custom_call.1} parent=1 // pred_region
      _
    $region21: #{tpu_custom_call.1} parent=1 // pred_fallthru
      _
    // Predicated region
    $region22: #{tpu_custom_call.1} parent=1 // pred_check
      _
    $region23: #{tpu_custom_call.1} parent=1 // pred_check_branch
      %104 = sbr.rel (0) target = $region25
    $region24: #{tpu_custom_call.1} parent=1 // pred_region
      _
    $region25: #{tpu_custom_call.1} parent=1 // pred_fallthru
      _
    // Predicated region
    $region26: #{tpu_custom_call.1} parent=1 // pred_check
      _
    $region27: #{tpu_custom_call.1} parent=1 // pred_check_branch
      %106 = sbr.rel (0) target = $region29
    $region28: #{tpu_custom_call.1} parent=1 // pred_region
      _
    $region29: #{tpu_custom_call.1} parent=1 // pred_fallthru
      _
    %107 = vsyncpa [#allocation3], 1

</llo_original>
